<compile_context>
chip_gen: v6e
topology: v6e:2x2x1
jax: 0.10.0
libtpu: 0.0.40
codegen_flags: <defaults>
</compile_context>

<pallas_src>
import jax
import jax.numpy as jnp
from jax.experimental import pallas as pl
from jax.experimental.pallas import tpu as pltpu


def channel_attention_kernel(x_ref, w1t_ref, w2t_ref, o_ref, acc_ref):
    # x_ref:   (Bt, C, HWt)  native dtype (f32 / bf16) — streamed tile of x
    # w1t_ref: (C, Cr)       f32  (conv1.weight[:, :, 0, 0].T, 1/HW folded in)
    # w2t_ref: (Cr, C)       f32  (conv2.weight[:, :, 0, 0].T)
    # o_ref:   (Bt, C)       gate output (written on the last HW step only)
    # acc_ref: (Bt, C)       f32 running spatial sum (VMEM scratch)
    hw_idx = pl.program_id(1)

    @pl.when(hw_idx == 0)
    def _init():
        acc_ref[...] = jnp.zeros_like(acc_ref)

    # Partial spatial reduction along the lane axis; always accumulate in f32
    # even when x is bf16 (running bf16 sums lose precision at large H*W).
    acc_ref[...] += jnp.sum(x_ref[...].astype(jnp.float32), axis=-1)

    @pl.when(hw_idx == pl.num_programs(1) - 1)
    def _finalize():
        pooled = acc_ref[...]                                    # (Bt, C); mean scale lives in w1t
        # Conv2d(C -> C//r, 1, bias=False) on a 1x1 map == matmul.
        h = jnp.dot(pooled, w1t_ref[...], preferred_element_type=jnp.float32)
        h = jnp.maximum(h, 0.0)                                  # ReLU
        # Conv2d(C//r -> C, 1, bias=False).
        gate = jnp.dot(h, w2t_ref[...], preferred_element_type=jnp.float32)
        # Note: for production configs C is a multiple of 128 -> lane-dense
        # unmasked stores; at C=64 the masked store is negligible (B*C elems).
        o_ref[...] = jax.nn.sigmoid(gate).astype(o_ref.dtype)    # Sigmoid


def _choose_hw_tile(hw, row_bytes, budget_bytes):
    """Largest multiple-of-128 divisor of hw whose x tile fits the budget."""
    best = None
    t = 128
    while t <= hw:
        if hw % t == 0 and t * row_bytes <= budget_bytes:
            best = t
        t += 128
    return best if best is not None else hw   # full extent is always legal


def channel_attention(x, w1, w2, *, max_block_bytes=6 * 1024 * 1024):
    """x: (B, C, H, W) NCHW;  w1: (Cr, C, 1, 1);  w2: (C, Cr, 1, 1)."""
    B, C, H, W = x.shape
    Cr = w1.shape[0]
    HW = H * W

    # Keep x in its native dtype: this kernel is pure HBM bandwidth on x and a
    # wrapper-side astype would cost a full extra read+write of x in HBM.
    x_flat = x.reshape(B, C, HW)

    # 1x1 convs == matmuls against pre-transposed weights; fold the 1/HW mean
    # scale into W1^T so the kernel only needs a raw spatial sum.
    w1t = (w1[:, :, 0, 0].T * (1.0 / HW)).astype(jnp.float32)     # (C, Cr)
    w2t = w2[:, :, 0, 0].T.astype(jnp.float32)                    # (Cr, C)

    # Batch tile: the (Bt, C) output block needs Bt % 8 == 0 or Bt == B.
    Bt = 8 if (B % 8 == 0) else B
    row_bytes = Bt * C * x.dtype.itemsize
    HWt = _choose_hw_tile(HW, row_bytes, max_block_bytes)
    grid = (B // Bt, HW // HWt)

    cost = pl.CostEstimate(
        flops=B * C * HW + 4 * B * C * Cr,          # spatial sum + two matmuls
        transcendentals=B * C,                      # sigmoid
        bytes_accessed=(x_flat.size * x.dtype.itemsize
                        + w1t.size * 4 + w2t.size * 4
                        + B * C * x.dtype.itemsize),
    )

    out = pl.pallas_call(
        channel_attention_kernel,
        out_shape=jax.ShapeDtypeStruct((B, C), x.dtype),
        grid_spec=pltpu.PrefetchScalarGridSpec(
            num_scalar_prefetch=0,
            grid=grid,
            in_specs=[
                pl.BlockSpec((Bt, C, HWt), lambda b, h: (b, 0, h)),
                pl.BlockSpec((C, Cr), lambda b, h: (0, 0)),
                pl.BlockSpec((Cr, C), lambda b, h: (0, 0)),
            ],
            out_specs=pl.BlockSpec((Bt, C), lambda b, h: (b, 0)),
            scratch_shapes=[pltpu.VMEM((Bt, C), jnp.float32)],
        ),
        compiler_params=pltpu.CompilerParams(
            dimension_semantics=("parallel", "arbitrary")),
        cost_estimate=cost,
    )(x_flat, w1t, w2t)

    return out.reshape(B, C, 1, 1)                  # match PyTorch output shape


def _reference(x, w1, w2):
    """Pure-JAX reference reproducing the PyTorch forward."""
    pooled = jnp.mean(x.astype(jnp.float32), axis=(2, 3))         # (B, C)
    h = jnp.maximum(pooled @ w1[:, :, 0, 0].T, 0.0)               # (B, Cr)
    out = jax.nn.sigmoid(h @ w2[:, :, 0, 0].T)                    # (B, C)
    return out[:, :, None, None]


if __name__ == "__main__":
    # Small shapes consistent with the module: channel=64, reduction=16 -> hidden=4.
    B, C, H, W = 2, 64, 16, 16
    reduction = 16
    Cr = C // reduction

    key = jax.random.PRNGKey(0)
    kx, k1, k2 = jax.random.split(key, 3)

    x = jax.random.normal(kx, (B, C, H, W), dtype=jnp.float32)
    # Deterministic synthetic weights (Conv2d weight shapes: (out, in, 1, 1)).
    w1 = jax.random.normal(k1, (Cr, C, 1, 1), dtype=jnp.float32) * 0.1
    w2 = jax.random.normal(k2, (C, Cr, 1, 1), dtype=jnp.float32) * 0.1

    ref = _reference(x, w1, w2)

    # 1) Default budget: single spatial tile (HW=256 fits comfortably).
    out1 = jax.block_until_ready(channel_attention(x, w1, w2))
    # 2) Tiny budget: forces HWt=128 -> 2 reduction steps, exercising the
    #    accumulator init/accumulate/finalize path.
    out2 = jax.block_until_ready(
        channel_attention(x, w1, w2, max_block_bytes=96 * 1024))

    for out in (out1, out2):
        assert out.shape == (B, C, 1, 1)
        assert jnp.allclose(out, ref, atol=1e-5, rtol=1e-5), "mismatch vs reference"

    print("KERNEL_OK")
</pallas_src>

<mosaic_0001>
module attributes {stable_mosaic.version = 11 : i64} {
  func.func @channel_attention_kernel(%arg0: i32, %arg1: i32, %arg2: memref<2x64x256xf32, #tpu.memory_space<vmem>>, %arg3: memref<64x4xf32, #tpu.memory_space<vmem>>, %arg4: memref<4x64xf32, #tpu.memory_space<vmem>>, %arg5: memref<2x64xf32, #tpu.memory_space<vmem>>, %arg6: memref<2x64xf32, #tpu.memory_space<vmem>>) attributes {dimension_semantics = [#tpu.dimension_semantics<parallel>, #tpu.dimension_semantics<arbitrary>], iteration_bounds = array<i64: 1, 1>, scalar_prefetch = 0 : i64, scratch_operands = 1 : i64, tpu.core_type = #tpu.core_type<tc>, window_params = [{transform_indices = @transform_0, window_bounds = array<i64: 2, 64, 256>}, {pipeline_mode = #tpu.pipeline_mode<synchronous>, transform_indices = @transform_1, window_bounds = array<i64: 64, 4>}, {pipeline_mode = #tpu.pipeline_mode<synchronous>, transform_indices = @transform_2, window_bounds = array<i64: 4, 64>}, {transform_indices = @transform_3, window_bounds = array<i64: 2, 64>}]} {
    %c0_i32 = arith.constant 0 : i32
    %0 = arith.cmpi eq, %arg1, %c0_i32 : i32
    %1 = arith.extui %0 : i1 to i32
    %c0_i32_0 = arith.constant 0 : i32
    %2 = arith.cmpi ne, %1, %c0_i32_0 : i32
    scf.if %2 {
      %cst_9 = arith.constant 0.000000e+00 : f32
      %11 = vector.broadcast %cst_9 : f32 to vector<2x64xf32>
      %c0_10 = arith.constant 0 : index
      %c0_11 = arith.constant 0 : index
      %12 = vector.load %arg6[%c0_10, %c0_11] : memref<2x64xf32, #tpu.memory_space<vmem>>, vector<2x64xf32>
      tpu.vector_store %arg6[%c0_10, %c0_11], %11 {strides = array<i32>} : memref<2x64xf32, #tpu.memory_space<vmem>>, vector<2x64xf32>,
    } else {
    }
    %c0 = arith.constant 0 : index
    %c0_1 = arith.constant 0 : index
    %3 = vector.load %arg6[%c0, %c0_1] : memref<2x64xf32, #tpu.memory_space<vmem>>, vector<2x64xf32>
    %c0_2 = arith.constant 0 : index
    %c0_3 = arith.constant 0 : index
    %c0_4 = arith.constant 0 : index
    %4 = vector.load %arg2[%c0_2, %c0_3, %c0_4] : memref<2x64x256xf32, #tpu.memory_space<vmem>>, vector<2x64x256xf32>
    %cst = arith.constant dense<0.000000e+00> : vector<2x64xf32>
    %5 = vector.multi_reduction <add>, %4, %cst [2] : vector<2x64x256xf32> to vector<2x64xf32>
    %6 = arith.addf %3, %5 : vector<2x64xf32>
    %c0_5 = arith.constant 0 : index
    %c0_6 = arith.constant 0 : index
    %7 = vector.load %arg6[%c0_5, %c0_6] : memref<2x64xf32, #tpu.memory_space<vmem>>, vector<2x64xf32>
    tpu.vector_store %arg6[%c0_5, %c0_6], %6 {strides = array<i32>} : memref<2x64xf32, #tpu.memory_space<vmem>>, vector<2x64xf32>,
    %c0_i32_7 = arith.constant 0 : i32
    %8 = arith.cmpi eq, %arg1, %c0_i32_7 : i32
    %9 = arith.extui %8 : i1 to i32
    %c0_i32_8 = arith.constant 0 : i32
    %10 = arith.cmpi ne, %9, %c0_i32_8 : i32
    scf.if %10 {
      %c0_9 = arith.constant 0 : index
      %c0_10 = arith.constant 0 : index
      %11 = vector.load %arg6[%c0_9, %c0_10] : memref<2x64xf32, #tpu.memory_space<vmem>>, vector<2x64xf32>
      %c0_11 = arith.constant 0 : index
      %c0_12 = arith.constant 0 : index
      %12 = vector.load %arg3[%c0_11, %c0_12] : memref<64x4xf32, #tpu.memory_space<vmem>>, vector<64x4xf32>
      %cst_13 = arith.constant dense<0.000000e+00> : vector<2x4xf32>
      %13 = tpu.matmul %11, %12, %cst_13 {dimension_numbers = #tpu.dot_dimension_numbers<[1], [0], [0], [1], [0, 0, 1, 1], [], []>} : vector<2x64xf32>, vector<64x4xf32>, vector<2x4xf32> -> vector<2x4xf32>
      %cst_14 = arith.constant 0.000000e+00 : f32
      %14 = vector.broadcast %cst_14 : f32 to vector<2x4xf32>
      %15 = arith.maximumf %13, %14 : vector<2x4xf32>
      %c0_15 = arith.constant 0 : index
      %c0_16 = arith.constant 0 : index
      %16 = vector.load %arg4[%c0_15, %c0_16] : memref<4x64xf32, #tpu.memory_space<vmem>>, vector<4x64xf32>
      %cst_17 = arith.constant dense<0.000000e+00> : vector<2x64xf32>
      %17 = tpu.matmul %15, %16, %cst_17 {dimension_numbers = #tpu.dot_dimension_numbers<[1], [0], [0], [1], [0, 0, 1, 1], [], []>} : vector<2x4xf32>, vector<4x64xf32>, vector<2x64xf32> -> vector<2x64xf32>
      %18 = arith.negf %17 : vector<2x64xf32>
      %19 = math.exp %18 : vector<2x64xf32>
      %cst_18 = arith.constant 1.000000e+00 : f32
      %20 = vector.broadcast %cst_18 : f32 to vector<2x64xf32>
      %21 = arith.addf %20, %19 : vector<2x64xf32>
      %22 = arith.divf %20, %21 : vector<2x64xf32>
      %c0_19 = arith.constant 0 : index
      %c0_20 = arith.constant 0 : index
      %23 = vector.load %arg5[%c0_19, %c0_20] : memref<2x64xf32, #tpu.memory_space<vmem>>, vector<2x64xf32>
      tpu.vector_store %arg5[%c0_19, %c0_20], %22 {strides = array<i32>} : memref<2x64xf32, #tpu.memory_space<vmem>>, vector<2x64xf32>,
    } else {
    }
    return
  }
  func.func @transform_0(%arg0: i32, %arg1: i32) -> (i32, i32, i32) {
    %c0_i32 = arith.constant 0 : i32
    %c0_i32_0 = arith.constant 0 : i32
    return %arg0, %c0_i32, %arg1 : i32, i32, i32
  }
  func.func @transform_1(%arg0: i32, %arg1: i32) -> (i32, i32) {
    %c0_i32 = arith.constant 0 : i32
    %c0_i32_0 = arith.constant 0 : i32
    %c0_i32_1 = arith.constant 0 : i32
    return %c0_i32, %c0_i32_0 : i32, i32
  }
  func.func @transform_2(%arg0: i32, %arg1: i32) -> (i32, i32) {
    %c0_i32 = arith.constant 0 : i32
    %c0_i32_0 = arith.constant 0 : i32
    %c0_i32_1 = arith.constant 0 : i32
    return %c0_i32, %c0_i32_0 : i32, i32
  }
  func.func @transform_3(%arg0: i32, %arg1: i32) -> (i32, i32) {
    %c0_i32 = arith.constant 0 : i32
    %c0_i32_0 = arith.constant 0 : i32
    return %arg0, %c0_i32 : i32, i32
  }
}

</mosaic_0001>

<llo_original>
// kernel: tpu_custom_call.1
$region0: #{tpu_custom_call.1}
  #allocation0 [shape = 'u32[]', space=smem, size = 0x4, offset = 0x4, fixed_abs, tag = 'smem constant byte address 0x4 - core index']
  #allocation1 [shape = 'u32[144,128]{1,0:T(1,128)}', space=vmem, size = 0x12000, scoped, tag = 'internal scratch']
  #allocation2 [shape = 'f32[2,64]{1,0:T(2,128)}', space=vmem, size = 0x400, scoped, tag = 'scratch operand']
  %s0 = inlined_call_operand.hbm [shape: f32[2,64,256], index: 0, kind: input, shape index: {}]
  %s1 = inlined_call_operand.vmem [shape: f32[64,4], index: 1, kind: input, shape index: {}]
  %s2 = inlined_call_operand.vmem [shape: f32[4,64], index: 2, kind: input, shape index: {}]
  %s3 = inlined_call_operand.hbm [shape: f32[2,64], index: 3, kind: output, shape index: {}]
  %s4 = sld [smem:[#allocation0]]
  $region34: #{tpu_custom_call.1} parent=0
    _
  %s6 = ssub.s32 1, %s4
  %s7 = scalar_select 0, %s6, %s4
  $region1: #{tpu_custom_call.1} parent=0
    #allocation3 [shape = 'u8[131072]{0}', space=vmem, size = 0x20000, scoped, tag = 'input window, operand 0, single buffered']
    #allocation4 [shape = 's32[1]{0}', space=sflag, size = 0x4, scoped, tag = 'scoped memory for tpu_custom_call.1']
    #allocation5 [shape = 's32[1]{0}', space=sflag, size = 0x4, scoped, tag = 'scoped memory for tpu_custom_call.1']
    #allocation6 [shape = 'u8[1024]{0}', space=vmem, size = 0x400, scoped, tag = 'output window, operand 0, single buffered']
    %8 = vsyncpa [#allocation4], 0
    %9 = vsyncpa [#allocation5], 0
    // Predicated region
    $region2: #{tpu_custom_call.1} parent=1 // pred_check
      _
    $region3: #{tpu_custom_call.1} parent=1 // pred_check_branch
      %11 = sbr.rel (0) target = $region5
    $region4: #{tpu_custom_call.1} parent=1 // pred_region
      %s13 = ssub.s32 4096, 4096
      %14 = vsyncadd [#allocation4], %s13
      %s15 = sshll.u32 [#allocation3], 4
      %s16 = int_to_ptr.vmem [resolvable:$true] %s15
      %21 = dma.hbm_to_vmem [thread:$0]  %s0, 4096, %s16, [#allocation4], 256, 256, 16
    $region5: #{tpu_custom_call.1} parent=1 // pred_fallthru
      _
    // Predicated region
    $region6: #{tpu_custom_call.1} parent=1 // pred_check
      _
    $region7: #{tpu_custom_call.1} parent=1 // pred_check_branch
      %23 = sbr.rel (0) target = $region9
    $region8: #{tpu_custom_call.1} parent=1 // pred_region
      _
    $region9: #{tpu_custom_call.1} parent=1 // pred_fallthru
      _
    // Predicated region
    $region10: #{tpu_custom_call.1} parent=1 // pred_check
      _
    $region11: #{tpu_custom_call.1} parent=1 // pred_check_branch
      %25 = sbr.rel (0) target = $region13
    $region12: #{tpu_custom_call.1} parent=1 // pred_region
      _
    $region13: #{tpu_custom_call.1} parent=1 // pred_fallthru
      _
    // Predicated region
    $region14: #{tpu_custom_call.1} parent=1 // pred_check
      _
    $region15: #{tpu_custom_call.1} parent=1 // pred_check_branch
      %27 = sbr.rel (0) target = $region17
    $region16: #{tpu_custom_call.1} parent=1 // pred_region
      %28 = dma.done [#allocation4], 4096
    $region17: #{tpu_custom_call.1} parent=1 // pred_fallthru
      _
    %p29 = scmp.eq.s32.totalorder 0, 0
    // Predicated region
    $region18: #{tpu_custom_call.1} parent=1 // pred_check
      %p30 = pneg %p29
    $region19: #{tpu_custom_call.1} parent=1 // pred_check_branch
      %32 = sbr.rel (%p30) target = $region21
    $region20: #{tpu_custom_call.1} parent=1 // pred_region
      %vm33 = vcmask 517120
      %34 = vst.msk [vmem:[#allocation2] sm:$0x3] %vm33, 0.0
    $region21: #{tpu_custom_call.1} parent=1 // pred_fallthru
      _
    %v35 = vld [vmem:[#allocation2] sm:$0x3]
    %v36 = vld [vmem:[#allocation3] sm:$0xff]
    %v37 = vld [vmem:[#allocation3 + $0x8] sm:$0xff]
    %v38 = vld [vmem:[#allocation3 + $0x10] sm:$0xff]
    %v39 = vld [vmem:[#allocation3 + $0x18] sm:$0xff]
    %v40 = vld [vmem:[#allocation3 + $0x20] sm:$0xff]
    %v41 = vld [vmem:[#allocation3 + $0x28] sm:$0xff]
    %v42 = vld [vmem:[#allocation3 + $0x30] sm:$0xff]
    %v43 = vld [vmem:[#allocation3 + $0x38] sm:$0xff]
    %v44 = vld [vmem:[#allocation3 + $0x40] sm:$0xff]
    %v45 = vld [vmem:[#allocation3 + $0x48] sm:$0xff]
    %v46 = vld [vmem:[#allocation3 + $0x50] sm:$0xff]
    %v47 = vld [vmem:[#allocation3 + $0x58] sm:$0xff]
    %v48 = vld [vmem:[#allocation3 + $0x60] sm:$0xff]
    %v49 = vld [vmem:[#allocation3 + $0x68] sm:$0xff]
    %v50 = vld [vmem:[#allocation3 + $0x70] sm:$0xff]
    %v51 = vld [vmem:[#allocation3 + $0x78] sm:$0xff]
    %v52 = vld [vmem:[#allocation3 + $0x80] sm:$0xff]
    %v53 = vld [vmem:[#allocation3 + $0x88] sm:$0xff]
    %v54 = vld [vmem:[#allocation3 + $0x90] sm:$0xff]
    %v55 = vld [vmem:[#allocation3 + $0x98] sm:$0xff]
    %v56 = vld [vmem:[#allocation3 + $0xa0] sm:$0xff]
    %v57 = vld [vmem:[#allocation3 + $0xa8] sm:$0xff]
    %v58 = vld [vmem:[#allocation3 + $0xb0] sm:$0xff]
    %v59 = vld [vmem:[#allocation3 + $0xb8] sm:$0xff]
    %v60 = vld [vmem:[#allocation3 + $0xc0] sm:$0xff]
    %v61 = vld [vmem:[#allocation3 + $0xc8] sm:$0xff]
    %v62 = vld [vmem:[#allocation3 + $0xd0] sm:$0xff]
    %v63 = vld [vmem:[#allocation3 + $0xd8] sm:$0xff]
    %v64 = vld [vmem:[#allocation3 + $0xe0] sm:$0xff]
    %v65 = vld [vmem:[#allocation3 + $0xe8] sm:$0xff]
    %v66 = vld [vmem:[#allocation3 + $0xf0] sm:$0xff]
    %v67 = vld [vmem:[#allocation3 + $0xf8] sm:$0xff]
    %v68 = vadd.f32 %v36, %v37
    %69 = vadd.xlane.f32.xlu0 %v68
    %v70 = vpop.xlane.xlu0 %69
    %v71 = vadd.f32 %v38, %v39
    %72 = vadd.xlane.f32.xlu0 %v71
    %v73 = vpop.xlane.xlu0 %72
    %v74 = vadd.f32 %v40, %v41
    %75 = vadd.xlane.f32.xlu0 %v74
    %v76 = vpop.xlane.xlu0 %75
    %v77 = vadd.f32 %v42, %v43
    %78 = vadd.xlane.f32.xlu0 %v77
    %v79 = vpop.xlane.xlu0 %78
    %v80 = vadd.f32 %v44, %v45
    %81 = vadd.xlane.f32.xlu0 %v80
    %v82 = vpop.xlane.xlu0 %81
    %v83 = vadd.f32 %v46, %v47
    %84 = vadd.xlane.f32.xlu0 %v83
    %v85 = vpop.xlane.xlu0 %84
    %v86 = vadd.f32 %v48, %v49
    %87 = vadd.xlane.f32.xlu0 %v86
    %v88 = vpop.xlane.xlu0 %87
    %v89 = vadd.f32 %v50, %v51
    %90 = vadd.xlane.f32.xlu0 %v89
    %v91 = vpop.xlane.xlu0 %90
    %v92 = vadd.f32 %v52, %v53
    %93 = vadd.xlane.f32.xlu0 %v92
    %v94 = vpop.xlane.xlu0 %93
    %v95 = vadd.f32 %v54, %v55
    %96 = vadd.xlane.f32.xlu0 %v95
    %v97 = vpop.xlane.xlu0 %96
    %v98 = vadd.f32 %v56, %v57
    %99 = vadd.xlane.f32.xlu0 %v98
    %v100 = vpop.xlane.xlu0 %99
    %v101 = vadd.f32 %v58, %v59
    %102 = vadd.xlane.f32.xlu0 %v101
    %v103 = vpop.xlane.xlu0 %102
    %v104 = vadd.f32 %v60, %v61
    %105 = vadd.xlane.f32.xlu0 %v104
    %v106 = vpop.xlane.xlu0 %105
    %v107 = vadd.f32 %v62, %v63
    %108 = vadd.xlane.f32.xlu0 %v107
    %v109 = vpop.xlane.xlu0 %108
    %v110 = vadd.f32 %v64, %v65
    %111 = vadd.xlane.f32.xlu0 %v110
    %v112 = vpop.xlane.xlu0 %111
    %v113 = vadd.f32 %v66, %v67
    %114 = vadd.xlane.f32.xlu0 %v113
    %v115 = vpop.xlane.xlu0 %114
    %v132 = vlaneseq
    %v133 = vand.u32 %v132, 127
    %v134 = vlaneseq
    %v135 = vshrl.u32 %v134, 7
    %v136 = vsub.s32 %v133, %v135
    %v137 = vrot.slane %v70, %v136
    %v138 = vadd.s32 %v133, 4294967288
    %v139 = vlaneseq
    %v140 = vshrl.u32 %v139, 7
    %v141 = vsub.s32 %v138, %v140
    %v142 = vrot.slane %v73, %v141
    %vm143 = vcmask 130112
    %v144 = vsel %vm143, %v142, %v137
    %v145 = vadd.s32 %v133, 4294967280
    %v146 = vlaneseq
    %v147 = vshrl.u32 %v146, 7
    %v148 = vsub.s32 %v145, %v147
    %v149 = vrot.slane %v76, %v148
    %vm150 = vcmask 195712
    %v151 = vsel %vm150, %v149, %v144
    %v152 = vadd.s32 %v133, 4294967272
    %v153 = vlaneseq
    %v154 = vshrl.u32 %v153, 7
    %v155 = vsub.s32 %v152, %v154
    %v156 = vrot.slane %v79, %v155
    %vm157 = vcmask 261312
    %v158 = vsel %vm157, %v156, %v151
    %v159 = vadd.s32 %v133, 4294967264
    %v160 = vlaneseq
    %v161 = vshrl.u32 %v160, 7
    %v162 = vsub.s32 %v159, %v161
    %v163 = vrot.slane %v82, %v162
    %vm164 = vcmask 326912
    %v165 = vsel %vm164, %v163, %v158
    %v166 = vadd.s32 %v133, 4294967256
    %v167 = vlaneseq
    %v168 = vshrl.u32 %v167, 7
    %v169 = vsub.s32 %v166, %v168
    %v170 = vrot.slane %v85, %v169
    %vm171 = vcmask 392512
    %v172 = vsel %vm171, %v170, %v165
    %v173 = vadd.s32 %v133, 4294967248
    %v174 = vlaneseq
    %v175 = vshrl.u32 %v174, 7
    %v176 = vsub.s32 %v173, %v175
    %v177 = vrot.slane %v88, %v176
    %vm178 = vcmask 458112
    %v179 = vsel %vm178, %v177, %v172
    %v180 = vadd.s32 %v133, 4294967240
    %v181 = vlaneseq
    %v182 = vshrl.u32 %v181, 7
    %v183 = vsub.s32 %v180, %v182
    %v184 = vrot.slane %v91, %v183
    %vm185 = vcmask 523712
    %v186 = vsel %vm185, %v184, %v179
    %v187 = vlaneseq
    %v188 = vshrl.u32 %v187, 7
    %v189 = vsub.s32 %v133, %v188
    %v190 = vrot.slane %v94, %v189
    %v191 = vlaneseq
    %v192 = vshrl.u32 %v191, 7
    %v193 = vsub.s32 %v138, %v192
    %v194 = vrot.slane %v97, %v193
    %v195 = vsel %vm143, %v194, %v190
    %v196 = vlaneseq
    %v197 = vshrl.u32 %v196, 7
    %v198 = vsub.s32 %v145, %v197
    %v199 = vrot.slane %v100, %v198
    %v200 = vsel %vm150, %v199, %v195
    %v201 = vlaneseq
    %v202 = vshrl.u32 %v201, 7
    %v203 = vsub.s32 %v152, %v202
    %v204 = vrot.slane %v103, %v203
    %v205 = vsel %vm157, %v204, %v200
    %v206 = vlaneseq
    %v207 = vshrl.u32 %v206, 7
    %v208 = vsub.s32 %v159, %v207
    %v209 = vrot.slane %v106, %v208
    %v210 = vsel %vm164, %v209, %v205
    %v211 = vlaneseq
    %v212 = vshrl.u32 %v211, 7
    %v213 = vsub.s32 %v166, %v212
    %v214 = vrot.slane %v109, %v213
    %v215 = vsel %vm171, %v214, %v210
    %v216 = vlaneseq
    %v217 = vshrl.u32 %v216, 7
    %v218 = vsub.s32 %v173, %v217
    %v219 = vrot.slane %v112, %v218
    %v220 = vsel %vm178, %v219, %v215
    %v221 = vlaneseq
    %v222 = vshrl.u32 %v221, 7
    %v223 = vsub.s32 %v180, %v222
    %v224 = vrot.slane %v115, %v223
    %v225 = vsel %vm185, %v224, %v220
    %vm226 = vcmask 1041409
    %v227 = vsel %vm226, %v225, %v186
    %v229 = vadd.f32 %v35, %v227
    %vm230 = vcmask 517120
    %231 = vst.msk [vmem:[#allocation2] sm:$0x3] %vm230, %v229
    // Predicated region
    $region22: #{tpu_custom_call.1} parent=1 // pred_check
      %p232 = pneg %p29
    $region23: #{tpu_custom_call.1} parent=1 // pred_check_branch
      %234 = sbr.rel (%p232) target = $region25
    $region24: #{tpu_custom_call.1} parent=1 // pred_region
      %v235 = vld [vmem:[#allocation2] sm:$0x3]
      %v236 = vld [vmem:[%s1] sm:$0xff]
      %v237 = vld [vmem:[%s1 + $0x8] sm:$0xff]
      %v238 = vld [vmem:[%s1 + $0x10] sm:$0xff]
      %v239 = vld [vmem:[%s1 + $0x18] sm:$0xff]
      %v240 = vld [vmem:[%s1 + $0x20] sm:$0xff]
      %v241 = vld [vmem:[%s1 + $0x28] sm:$0xff]
      %v242 = vld [vmem:[%s1 + $0x30] sm:$0xff]
      %v243 = vld [vmem:[%s1 + $0x38] sm:$0xff]
      %vm244 = vcmask 523264
      %v246 = vsel %vm244, %v235, 0
      %248 = vmatprep.subr.mxu0 0.0
      %249 = vmatpush1.msra.mxu0 0.0
      %250 = vmatprep.subr.mxu0 0.0
      %251 = vmatpush1.msra.mxu0 0.0
      %252 = vmatprep.subr.mxu0 0.0
      %253 = vmatpush1.msra.mxu0 0.0
      %254 = vmatprep.subr.mxu0 0.0
      %255 = vmatpush1.msra.mxu0 0.0
      %256 = vmatprep.subr.mxu0 0.0
      %257 = vmatpush1.msra.mxu0 0.0
      %258 = vmatprep.subr.mxu0 0.0
      %259 = vmatpush1.msra.mxu0 0.0
      %260 = vmatprep.subr.mxu0 0.0
      %261 = vmatpush1.msra.mxu0 0.0
      %262 = vmatprep.subr.mxu0 0.0
      %263 = vmatpush1.msra.mxu0 0.0
      %264 = vmatprep.subr.mxu0 0.0
      %265 = vmatpush1.msra.mxu0 %v243
      %266 = vmatprep.subr.mxu0 0.0
      %267 = vmatpush1.msra.mxu0 %v242
      %268 = vmatprep.subr.mxu0 0.0
      %269 = vmatpush1.msra.mxu0 %v241
      %270 = vmatprep.subr.mxu0 0.0
      %271 = vmatpush1.msra.mxu0 %v240
      %272 = vmatprep.subr.mxu0 0.0
      %273 = vmatpush1.msra.mxu0 %v239
      %274 = vmatprep.subr.mxu0 0.0
      %275 = vmatpush1.msra.mxu0 %v238
      %276 = vmatprep.subr.mxu0 0.0
      %277 = vmatpush1.msra.mxu0 %v237
      %278 = vmatprep.subr.mxu0 0.0
      %279 = vmatpush1.msra.mxu0 %v236
      %280 = vmatprep.subr.mxu0 0.0
      %281 = vmatpush2.msra.mxu0 0.0
      %282 = vmatprep.subr.mxu0 0.0
      %283 = vmatpush2.msra.mxu0 0.0
      %284 = vmatprep.subr.mxu0 0.0
      %285 = vmatpush2.msra.mxu0 0.0
      %286 = vmatprep.subr.mxu0 0.0
      %287 = vmatpush2.msra.mxu0 0.0
      %288 = vmatprep.subr.mxu0 0.0
      %289 = vmatpush2.msra.mxu0 0.0
      %290 = vmatprep.subr.mxu0 0.0
      %291 = vmatpush2.msra.mxu0 0.0
      %292 = vmatprep.subr.mxu0 0.0
      %293 = vmatpush2.msra.mxu0 0.0
      %294 = vmatprep.subr.mxu0 0.0
      %295 = vmatpush2.msra.mxu0 0.0
      %296 = vmatprep.subr.mxu0 0.0
      %297 = vmatpush2.msra.mxu0 0.0
      %298 = vmatprep.subr.mxu0 0.0
      %299 = vmatpush2.msra.mxu0 0.0
      %300 = vmatprep.subr.mxu0 0.0
      %301 = vmatpush2.msra.mxu0 0.0
      %302 = vmatprep.subr.mxu0 0.0
      %303 = vmatpush2.msra.mxu0 0.0
      %304 = vmatprep.subr.mxu0 0.0
      %305 = vmatpush2.msra.mxu0 0.0
      %306 = vmatprep.subr.mxu0 0.0
      %307 = vmatpush2.msra.mxu0 0.0
      %308 = vmatprep.subr.mxu0 0.0
      %309 = vmatpush2.msra.mxu0 0.0
      %310 = vmatprep.subr.mxu0 0.0
      %311 = vmatpush2.msra.mxu0 0.0
      %312 = vmatprep.mubr.f32.mxu0 0.0
      %313 = vmatmul.mubr.f32.gmra.mxu0 %v246
      %v314 = vpop.f32.mrf.mxu0
      %v315 = vadd.f32 0.0, %v314
      %v316 = vpop.f32.mrf.mxu0
      %317 = vdwg.mxu0
      %v318 = vmax.f32 %v315, 0.0
      %v319 = vld [vmem:[%s2] sm:$0xf]
      %vm320 = vcmask 31744
      %v322 = vsel %vm320, %v318, 0
      %vm324 = vcmask 1043456
      %v326 = vsel %vm324, %v319, 0
      %328 = vmatprep.subr.mxu0 0.0
      %329 = vmatpush1.msra.mxu0 0.0
      %330 = vmatprep.subr.mxu0 0.0
      %331 = vmatpush1.msra.mxu0 0.0
      %332 = vmatprep.subr.mxu0 0.0
      %333 = vmatpush1.msra.mxu0 0.0
      %334 = vmatprep.subr.mxu0 0.0
      %335 = vmatpush1.msra.mxu0 0.0
      %336 = vmatprep.subr.mxu0 0.0
      %337 = vmatpush1.msra.mxu0 0.0
      %338 = vmatprep.subr.mxu0 0.0
      %339 = vmatpush1.msra.mxu0 0.0
      %340 = vmatprep.subr.mxu0 0.0
      %341 = vmatpush1.msra.mxu0 0.0
      %342 = vmatprep.subr.mxu0 0.0
      %343 = vmatpush1.msra.mxu0 0.0
      %344 = vmatprep.subr.mxu0 0.0
      %345 = vmatpush1.msra.mxu0 0.0
      %346 = vmatprep.subr.mxu0 0.0
      %347 = vmatpush1.msra.mxu0 0.0
      %348 = vmatprep.subr.mxu0 0.0
      %349 = vmatpush1.msra.mxu0 0.0
      %350 = vmatprep.subr.mxu0 0.0
      %351 = vmatpush1.msra.mxu0 0.0
      %352 = vmatprep.subr.mxu0 0.0
      %353 = vmatpush1.msra.mxu0 0.0
      %354 = vmatprep.subr.mxu0 0.0
      %355 = vmatpush1.msra.mxu0 0.0
      %356 = vmatprep.subr.mxu0 0.0
      %357 = vmatpush1.msra.mxu0 0.0
      %358 = vmatprep.subr.mxu0 0.0
      %359 = vmatpush1.msra.mxu0 %v326
      %360 = vmatprep.subr.mxu0 0.0
      %361 = vmatpush2.msra.mxu0 0.0
      %362 = vmatprep.subr.mxu0 0.0
      %363 = vmatpush2.msra.mxu0 0.0
      %364 = vmatprep.subr.mxu0 0.0
      %365 = vmatpush2.msra.mxu0 0.0
      %366 = vmatprep.subr.mxu0 0.0
      %367 = vmatpush2.msra.mxu0 0.0
      %368 = vmatprep.subr.mxu0 0.0
      %369 = vmatpush2.msra.mxu0 0.0
      %370 = vmatprep.subr.mxu0 0.0
      %371 = vmatpush2.msra.mxu0 0.0
      %372 = vmatprep.subr.mxu0 0.0
      %373 = vmatpush2.msra.mxu0 0.0
      %374 = vmatprep.subr.mxu0 0.0
      %375 = vmatpush2.msra.mxu0 0.0
      %376 = vmatprep.subr.mxu0 0.0
      %377 = vmatpush2.msra.mxu0 0.0
      %378 = vmatprep.subr.mxu0 0.0
      %379 = vmatpush2.msra.mxu0 0.0
      %380 = vmatprep.subr.mxu0 0.0
      %381 = vmatpush2.msra.mxu0 0.0
      %382 = vmatprep.subr.mxu0 0.0
      %383 = vmatpush2.msra.mxu0 0.0
      %384 = vmatprep.subr.mxu0 0.0
      %385 = vmatpush2.msra.mxu0 0.0
      %386 = vmatprep.subr.mxu0 0.0
      %387 = vmatpush2.msra.mxu0 0.0
      %388 = vmatprep.subr.mxu0 0.0
      %389 = vmatpush2.msra.mxu0 0.0
      %390 = vmatprep.subr.mxu0 0.0
      %391 = vmatpush2.msra.mxu0 0.0
      %392 = vmatprep.mubr.f32.mxu0 0.0
      %393 = vmatmul.mubr.f32.gmra.mxu0 %v322
      %v394 = vpop.f32.mrf.mxu0
      %v395 = vadd.f32 0.0, %v394
      %v396 = vpop.f32.mrf.mxu0
      %397 = vdwg.mxu0
      %v398 = vxor.u32 %v395, 2147483648
      %v399 = vmul.f32 %v398, 1.442695
      %v400 = vpow.pop %v399
      %v401 = vadd.f32 %v400, 1.0
      %v402 = vrcp.pop %v401
      %v403 = vmul.f32 1.0, %v402
      %404 = vst.msk [vmem:[#allocation6] sm:$0x3] %vm230, %v403
    $region25: #{tpu_custom_call.1} parent=1 // pred_fallthru
      _
    // Predicated region
    $region26: #{tpu_custom_call.1} parent=1 // pred_check
      _
    $region27: #{tpu_custom_call.1} parent=1 // pred_check_branch
      %406 = sbr.rel (0) target = $region29
    $region28: #{tpu_custom_call.1} parent=1 // pred_region
      %s408 = ssub.s32 32, 32
      %409 = vsyncadd [#allocation5], %s408
      %s411 = sshll.u32 [#allocation6], 4
      %s412 = int_to_ptr.vmem [resolvable:$true] %s411
      %414 = dma.vmem_to_hbm [thread:$0]  %s412, 32, %s3, [#allocation5]
    $region29: #{tpu_custom_call.1} parent=1 // pred_fallthru
      _
    // Predicated region
    $region30: #{tpu_custom_call.1} parent=1 // pred_check
      _
    $region31: #{tpu_custom_call.1} parent=1 // pred_check_branch
      %416 = sbr.rel (0) target = $region33
    $region32: #{tpu_custom_call.1} parent=1 // pred_region
      %417 = dma.done [#allocation5], 32
    $region33: #{tpu_custom_call.1} parent=1 // pred_fallthru
      _
    %418 = vsyncpa [#allocation4], 1
    %419 = vsyncpa [#allocation5], 1

</llo_original>
